<compile_context>
chip_gen: v7x
topology: tpu7x:2x2x1
jax: 0.10.0
libtpu: 0.0.40
codegen_flags: <defaults>
</compile_context>

<pallas_src>
import functools

import jax
import jax.numpy as jnp
from jax.experimental import pallas as pl
from jax.experimental.pallas import tpu as pltpu


def _core_model_kernel(x_ref, m_ref, wc_ref, bc_ref, wf_ref, bf_ref,
                       out_ref, acc_ref, *, wp, ts, halo):
    """One (batch, spatial-tile) grid step of the fused classifier.

    x_ref  : (1, Cin, L)    bf16  zero-padded, flattened image (loaded per batch)
    m_ref  : (1, Lm)        f32   valid-output-position mask (loaded once)
    wc_ref : (Cmid, 9*Cin)  bf16  conv weights, tap-major layout
    bc_ref : (Cmid, 1)      f32   conv bias
    wf_ref : (NC, Cmid)     f32   FC weight / (H*W)  (pool scale folded in)
    bf_ref : (NC, 1)        f32   FC bias
    out_ref: (1, NC, 1)     f32   logits for this batch element
    acc_ref: (Cmid, 1)      f32   pooled-activation accumulator across tiles
    """
    s = pl.program_id(1)

    @pl.when(s == 0)
    def _init():
        acc_ref[...] = jnp.zeros_like(acc_ref)

    # Aligned window covering this tile plus the 3x3 halo (halo rounded to 128).
    q0 = pl.multiple_of(s * ts, 128)
    win = x_ref[0, :, pl.ds(q0, ts + halo)]                  # (Cin, TS+halo) bf16

    # Build the 9 taps in VMEM (static lane-offset slices), one fused matmul.
    offs = [dy * wp + dx for dy in range(3) for dx in range(3)]
    patch = jnp.concatenate([win[:, o:o + ts] for o in offs], axis=0)  # (9Cin, TS)

    conv = jnp.dot(wc_ref[...], patch,
                   preferred_element_type=jnp.float32)       # (Cmid, TS) f32, MXU
    act = jnp.maximum(conv + bc_ref[...], 0.0)               # f32 bias + ReLU, VPU

    # Drop padded columns / tail rows, then spatial sum as a lane reduction (XLU).
    maskf = m_ref[:, pl.ds(q0, ts)]                          # (1, TS) f32
    acc_ref[...] += jnp.sum(act * maskf, axis=1, keepdims=True)   # (Cmid, 1)

    @pl.when(s == pl.num_programs(1) - 1)
    def _finalize():
        # FC head once per batch element; 1/(H*W) is folded into wf.
        logits = jnp.dot(wf_ref[...], acc_ref[...],
                         preferred_element_type=jnp.float32,
                         precision=jax.lax.Precision.HIGHEST) + bf_ref[...]
        out_ref[0] = logits.astype(out_ref.dtype)


def _vmem_capacity_bytes():
    """Per-chip VMEM capacity (v7x-safe 64 MiB fallback)."""
    try:
        info = pltpu.get_tpu_info()
        return int(getattr(info, "vmem_capacity_bytes", 64 << 20))
    except Exception:
        return 64 << 20


def _pick_spatial_tile(q, bytes_per_lane, vmem_cap):
    """Largest multiple-of-128 tile under a per-chip VMEM-derived budget."""
    budget = min(vmem_cap // 8, 8 << 20)          # compute working-set budget
    ts_cap = max(128, (budget // bytes_per_lane) // 128 * 128)
    return min(pl.cdiv(q, 128) * 128, ts_cap)


def prepare_params(params, hw):
    """One-time re-layout of PyTorch-style parameters into kernel operands."""
    wc_oihw, bc, wf, bf = params
    cmid, cin, kh, kw = wc_oihw.shape
    # (O,I,kH,kW) -> (O, kH*kW*I): tap-major (dy, dx, cin), matching the kernel.
    wc_flat = jnp.transpose(wc_oihw, (0, 2, 3, 1)).reshape(cmid, kh * kw * cin)
    return (wc_flat.astype(jnp.bfloat16),            # conv weight, bf16 for MXU
            bc[:, None].astype(jnp.float32),         # conv bias, f32 (post-matmul add)
            (wf / float(hw)).astype(jnp.float32),    # FC weight with pool scale folded
            bf[:, None].astype(jnp.float32))         # FC bias


def core_forward(img_nchw, prepared):
    """Equivalent of Core.forward(img): returns logits of the wrapped model."""
    wc, bc_col, wf_scaled, bf_col = prepared
    B, Cin, H, W = img_nchw.shape
    Hp, Wp = H + 2, W + 2
    Q = H * Wp                       # output positions in padded-column coords
    Cmid = wc.shape[0]
    K = wc.shape[1]                  # 9 * Cin
    NC = wf_scaled.shape[0]

    vmem_cap = _vmem_capacity_bytes()
    # Per-lane compute working set: taps (bf16) + window (bf16) + conv/act (f32) + mask.
    bytes_per_lane = K * 2 + Cin * 2 + 2 * Cmid * 4 + 4 + 16
    TS = _pick_spatial_tile(Q, bytes_per_lane, vmem_cap)
    halo = pl.cdiv(2 * Wp + 2, 128) * 128
    n_s = pl.cdiv(Q, TS)
    L = n_s * TS + halo              # flattened per-(b,cin) length incl. halo slack
    Lm = n_s * TS

    # Zero-pad (SAME conv halo), flatten padded spatial, right-pad to L; bf16.
    xp = jnp.pad(img_nchw, ((0, 0), (0, 0), (1, 1), (1, 1)))
    xpf = xp.reshape(B, Cin, Hp * Wp)
    xpf = jnp.pad(xpf, ((0, 0), (0, 0), (0, L - Hp * Wp))).astype(jnp.bfloat16)

    # Valid-output mask over q = y*Wp + x: keep x < W and y < H (built once).
    q = jnp.arange(Lm, dtype=jnp.int32)
    mask = (((q % Wp) < W) & (q < Q)).astype(jnp.float32)[None, :]   # (1, Lm)

    kernel = functools.partial(_core_model_kernel, wp=Wp, ts=TS, halo=halo)

    need = 2 * Cin * L * 2 + 2 * Lm * 4 + bytes_per_lane * TS + (1 << 20)
    vmem_limit = int(min(vmem_cap * 3 // 4, max(32 << 20, 2 * need)))

    out = pl.pallas_call(
        kernel,
        out_shape=jax.ShapeDtypeStruct((B, NC, 1), jnp.float32),
        grid_spec=pltpu.PrefetchScalarGridSpec(
            num_scalar_prefetch=0,
            grid=(B, n_s),
            in_specs=[
                pl.BlockSpec((1, Cin, L), lambda b, s: (b, 0, 0)),   # image (per batch)
                pl.BlockSpec((1, Lm), lambda b, s: (0, 0)),          # mask (once)
                pl.BlockSpec((Cmid, K), lambda b, s: (0, 0)),        # conv weight
                pl.BlockSpec((Cmid, 1), lambda b, s: (0, 0)),        # conv bias
                pl.BlockSpec((NC, Cmid), lambda b, s: (0, 0)),       # FC weight
                pl.BlockSpec((NC, 1), lambda b, s: (0, 0)),          # FC bias
            ],
            out_specs=pl.BlockSpec((1, NC, 1), lambda b, s: (b, 0, 0)),
            scratch_shapes=[pltpu.VMEM((Cmid, 1), jnp.float32)],
        ),
        compiler_params=pltpu.CompilerParams(
            dimension_semantics=("parallel", "arbitrary"),
            vmem_limit_bytes=vmem_limit,
        ),
    )(xpf, mask, wc, bc_col, wf_scaled, bf_col)
    return out[:, :, 0]


def init_params(key, cin=4, cmid=8, num_classes=10):
    """Deterministic synthetic parameters, PyTorch layouts."""
    k1, k2, k3, k4 = jax.random.split(key, 4)
    wc = jax.random.normal(k1, (cmid, cin, 3, 3), jnp.float32) * 0.1    # Conv2d (O,I,kH,kW)
    bc = jax.random.normal(k2, (cmid,), jnp.float32) * 0.1              # Conv2d bias
    wf = jax.random.normal(k3, (num_classes, cmid), jnp.float32) * 0.1  # Linear (out,in)
    bf = jax.random.normal(k4, (num_classes,), jnp.float32) * 0.1       # Linear bias
    return wc, bc, wf, bf


def _reference_forward(img, params):
    """Pure-JAX f32 reference of the same synthetic classifier."""
    wc, bc, wf, bf = params
    y = jax.lax.conv_general_dilated(
        img, wc, window_strides=(1, 1), padding="SAME",
        dimension_numbers=("NCHW", "OIHW", "NCHW"))
    y = jnp.maximum(y + bc[None, :, None, None], 0.0)
    pooled = y.mean(axis=(2, 3))
    return pooled @ wf.T + bf


if __name__ == "__main__":
    key = jax.random.PRNGKey(0)
    k_img, k_par = jax.random.split(key)

    B, C, H, W = 2, 4, 16, 16
    img = jax.random.normal(k_img, (B, C, H, W), jnp.float32)   # PyTorch-style NCHW
    params = init_params(k_par, cin=C, cmid=8, num_classes=10)

    prepared = prepare_params(params, H * W)                    # one-time re-layout
    logits = jax.jit(core_forward)(img, prepared)
    jax.block_until_ready(logits)

    assert logits.shape == (B, 10) and logits.dtype == jnp.float32
    ref = _reference_forward(img, params)
    max_err = float(jnp.max(jnp.abs(logits - ref)))
    assert max_err < 5e-2, f"mismatch vs f32 reference: {max_err}"
    print("KERNEL_OK")
</pallas_src>

<mosaic_0001>
module attributes {stable_mosaic.version = 11 : i64} {
  func.func @_core_model_kernel(%arg0: i32, %arg1: i32, %arg2: memref<1x4x512xbf16, #tpu.memory_space<vmem>>, %arg3: memref<1x384xf32, #tpu.memory_space<vmem>>, %arg4: memref<8x36xbf16, #tpu.memory_space<vmem>>, %arg5: memref<8x1xf32, #tpu.memory_space<vmem>>, %arg6: memref<10x8xf32, #tpu.memory_space<vmem>>, %arg7: memref<10x1xf32, #tpu.memory_space<vmem>>, %arg8: memref<1x10x1xf32, #tpu.memory_space<vmem>>, %arg9: memref<8x1xf32, #tpu.memory_space<vmem>>) attributes {dimension_semantics = [#tpu.dimension_semantics<parallel>, #tpu.dimension_semantics<arbitrary>], iteration_bounds = array<i64: 2, 1>, scalar_prefetch = 0 : i64, scratch_operands = 1 : i64, tpu.core_type = #tpu.core_type<tc>, window_params = [{transform_indices = @transform_0, window_bounds = array<i64: 1, 4, 512>}, {pipeline_mode = #tpu.pipeline_mode<synchronous>, transform_indices = @transform_1, window_bounds = array<i64: 1, 384>}, {pipeline_mode = #tpu.pipeline_mode<synchronous>, transform_indices = @transform_2, window_bounds = array<i64: 8, 36>}, {pipeline_mode = #tpu.pipeline_mode<synchronous>, transform_indices = @transform_3, window_bounds = array<i64: 8, 1>}, {pipeline_mode = #tpu.pipeline_mode<synchronous>, transform_indices = @transform_4, window_bounds = array<i64: 10, 8>}, {pipeline_mode = #tpu.pipeline_mode<synchronous>, transform_indices = @transform_5, window_bounds = array<i64: 10, 1>}, {transform_indices = @transform_6, window_bounds = array<i64: 1, 10, 1>}]} {
    %c0_i32 = arith.constant 0 : i32
    %0 = arith.cmpi eq, %arg1, %c0_i32 : i32
    %1 = arith.extui %0 : i1 to i32
    %c0_i32_0 = arith.constant 0 : i32
    %2 = arith.cmpi ne, %1, %c0_i32_0 : i32
    scf.if %2 {
      %cst_15 = arith.constant 0.000000e+00 : f32
      %37 = vector.broadcast %cst_15 : f32 to vector<8x1xf32>
      %c0_16 = arith.constant 0 : index
      %c0_17 = arith.constant 0 : index
      %38 = vector.load %arg9[%c0_16, %c0_17] : memref<8x1xf32, #tpu.memory_space<vmem>>, vector<8x1xf32>
      tpu.vector_store %arg9[%c0_16, %c0_17], %37 {strides = array<i32>} : memref<8x1xf32, #tpu.memory_space<vmem>>, vector<8x1xf32>,
    } else {
    }
    %c384_i32 = arith.constant 384 : i32
    %3 = arith.muli %arg1, %c384_i32 : i32
    %4 = tpu.assume_multiple %3, 128 : i32
    %c0 = arith.constant 0 : index
    %c0_1 = arith.constant 0 : index
    %5 = arith.index_cast %4 : i32 to index
    %6 = vector.load %arg2[%c0, %c0_1, %5] : memref<1x4x512xbf16, #tpu.memory_space<vmem>>, vector<1x4x512xbf16>
    %7 = vector.shape_cast %6 : vector<1x4x512xbf16> to vector<4x512xbf16>
    %8 = vector.extract_strided_slice %7 {offsets = [0, 0], sizes = [4, 384], strides = [1, 1]} : vector<4x512xbf16> to vector<4x384xbf16>
    %9 = vector.extract_strided_slice %7 {offsets = [0, 1], sizes = [4, 384], strides = [1, 1]} : vector<4x512xbf16> to vector<4x384xbf16>
    %10 = vector.extract_strided_slice %7 {offsets = [0, 2], sizes = [4, 384], strides = [1, 1]} : vector<4x512xbf16> to vector<4x384xbf16>
    %11 = vector.extract_strided_slice %7 {offsets = [0, 18], sizes = [4, 384], strides = [1, 1]} : vector<4x512xbf16> to vector<4x384xbf16>
    %12 = vector.extract_strided_slice %7 {offsets = [0, 19], sizes = [4, 384], strides = [1, 1]} : vector<4x512xbf16> to vector<4x384xbf16>
    %13 = vector.extract_strided_slice %7 {offsets = [0, 20], sizes = [4, 384], strides = [1, 1]} : vector<4x512xbf16> to vector<4x384xbf16>
    %14 = vector.extract_strided_slice %7 {offsets = [0, 36], sizes = [4, 384], strides = [1, 1]} : vector<4x512xbf16> to vector<4x384xbf16>
    %15 = vector.extract_strided_slice %7 {offsets = [0, 37], sizes = [4, 384], strides = [1, 1]} : vector<4x512xbf16> to vector<4x384xbf16>
    %16 = vector.extract_strided_slice %7 {offsets = [0, 38], sizes = [4, 384], strides = [1, 1]} : vector<4x512xbf16> to vector<4x384xbf16>
    %17 = tpu.concatenate %8, %9, %10, %11, %12, %13, %14, %15, %16 in 0 : vector<4x384xbf16>, vector<4x384xbf16>, vector<4x384xbf16>, vector<4x384xbf16>, vector<4x384xbf16>, vector<4x384xbf16>, vector<4x384xbf16>, vector<4x384xbf16>, vector<4x384xbf16> -> vector<36x384xbf16>
    %c0_2 = arith.constant 0 : index
    %c0_3 = arith.constant 0 : index
    %18 = vector.load %arg4[%c0_2, %c0_3] : memref<8x36xbf16, #tpu.memory_space<vmem>>, vector<8x36xbf16>
    %cst = arith.constant dense<0.000000e+00> : vector<8x384xf32>
    %19 = tpu.matmul %18, %17, %cst {dimension_numbers = #tpu.dot_dimension_numbers<[1], [0], [0], [1], [0, 0, 1, 1], [], []>} : vector<8x36xbf16>, vector<36x384xbf16>, vector<8x384xf32> -> vector<8x384xf32>
    %c0_4 = arith.constant 0 : index
    %c0_5 = arith.constant 0 : index
    %20 = vector.load %arg5[%c0_4, %c0_5] : memref<8x1xf32, #tpu.memory_space<vmem>>, vector<8x1xf32>
    %21 = vector.broadcast %20 : vector<8x1xf32> to vector<8x384xf32>
    %22 = arith.addf %19, %21 : vector<8x384xf32>
    %cst_6 = arith.constant 0.000000e+00 : f32
    %23 = vector.broadcast %cst_6 : f32 to vector<8x384xf32>
    %24 = arith.maximumf %22, %23 : vector<8x384xf32>
    %c0_7 = arith.constant 0 : index
    %25 = arith.index_cast %4 : i32 to index
    %26 = vector.load %arg3[%c0_7, %25] : memref<1x384xf32, #tpu.memory_space<vmem>>, vector<1x384xf32>
    %c0_8 = arith.constant 0 : index
    %c0_9 = arith.constant 0 : index
    %27 = vector.load %arg9[%c0_8, %c0_9] : memref<8x1xf32, #tpu.memory_space<vmem>>, vector<8x1xf32>
    %28 = vector.broadcast %26 : vector<1x384xf32> to vector<8x384xf32>
    %29 = arith.mulf %24, %28 : vector<8x384xf32>
    %cst_10 = arith.constant dense<0.000000e+00> : vector<8xf32>
    %30 = vector.multi_reduction <add>, %29, %cst_10 [1] : vector<8x384xf32> to vector<8xf32>
    %31 = vector.shape_cast %30 : vector<8xf32> to vector<8x1xf32>
    %32 = arith.addf %27, %31 : vector<8x1xf32>
    %c0_11 = arith.constant 0 : index
    %c0_12 = arith.constant 0 : index
    %33 = vector.load %arg9[%c0_11, %c0_12] : memref<8x1xf32, #tpu.memory_space<vmem>>, vector<8x1xf32>
    tpu.vector_store %arg9[%c0_11, %c0_12], %32 {strides = array<i32>} : memref<8x1xf32, #tpu.memory_space<vmem>>, vector<8x1xf32>,
    %c0_i32_13 = arith.constant 0 : i32
    %34 = arith.cmpi eq, %arg1, %c0_i32_13 : i32
    %35 = arith.extui %34 : i1 to i32
    %c0_i32_14 = arith.constant 0 : i32
    %36 = arith.cmpi ne, %35, %c0_i32_14 : i32
    scf.if %36 {
      %c0_15 = arith.constant 0 : index
      %c0_16 = arith.constant 0 : index
      %37 = vector.load %arg6[%c0_15, %c0_16] : memref<10x8xf32, #tpu.memory_space<vmem>>, vector<10x8xf32>
      %c0_17 = arith.constant 0 : index
      %c0_18 = arith.constant 0 : index
      %38 = vector.load %arg9[%c0_17, %c0_18] : memref<8x1xf32, #tpu.memory_space<vmem>>, vector<8x1xf32>
      %cst_19 = arith.constant dense<0.000000e+00> : vector<10x1xf32>
      %39 = tpu.matmul %37, %38, %cst_19 {dimension_numbers = #tpu.dot_dimension_numbers<[1], [0], [0], [1], [0, 0, 1, 1], [], []>, precision = #tpu.contract_precision<fp32>} : vector<10x8xf32>, vector<8x1xf32>, vector<10x1xf32> -> vector<10x1xf32>
      %c0_20 = arith.constant 0 : index
      %c0_21 = arith.constant 0 : index
      %40 = vector.load %arg7[%c0_20, %c0_21] : memref<10x1xf32, #tpu.memory_space<vmem>>, vector<10x1xf32>
      %41 = arith.addf %39, %40 : vector<10x1xf32>
      %c0_22 = arith.constant 0 : index
      %c0_23 = arith.constant 0 : index
      %c0_24 = arith.constant 0 : index
      %42 = vector.load %arg8[%c0_22, %c0_23, %c0_24] : memref<1x10x1xf32, #tpu.memory_space<vmem>>, vector<1x10x1xf32>
      %43 = vector.shape_cast %42 : vector<1x10x1xf32> to vector<10x1xf32>
      %44 = vector.shape_cast %41 : vector<10x1xf32> to vector<1x10x1xf32>
      tpu.vector_store %arg8[%c0_22, %c0_23, %c0_24], %44 {strides = array<i32>} : memref<1x10x1xf32, #tpu.memory_space<vmem>>, vector<1x10x1xf32>,
    } else {
    }
    return
  }
  func.func @transform_0(%arg0: i32, %arg1: i32) -> (i32, i32, i32) {
    %c0_i32 = arith.constant 0 : i32
    %c0_i32_0 = arith.constant 0 : i32
    %c0_i32_1 = arith.constant 0 : i32
    return %arg0, %c0_i32, %c0_i32_0 : i32, i32, i32
  }
  func.func @transform_1(%arg0: i32, %arg1: i32) -> (i32, i32) {
    %c0_i32 = arith.constant 0 : i32
    %c0_i32_0 = arith.constant 0 : i32
    %c0_i32_1 = arith.constant 0 : i32
    return %c0_i32, %c0_i32_0 : i32, i32
  }
  func.func @transform_2(%arg0: i32, %arg1: i32) -> (i32, i32) {
    %c0_i32 = arith.constant 0 : i32
    %c0_i32_0 = arith.constant 0 : i32
    %c0_i32_1 = arith.constant 0 : i32
    return %c0_i32, %c0_i32_0 : i32, i32
  }
  func.func @transform_3(%arg0: i32, %arg1: i32) -> (i32, i32) {
    %c0_i32 = arith.constant 0 : i32
    %c0_i32_0 = arith.constant 0 : i32
    %c0_i32_1 = arith.constant 0 : i32
    return %c0_i32, %c0_i32_0 : i32, i32
  }
  func.func @transform_4(%arg0: i32, %arg1: i32) -> (i32, i32) {
    %c0_i32 = arith.constant 0 : i32
    %c0_i32_0 = arith.constant 0 : i32
    %c0_i32_1 = arith.constant 0 : i32
    return %c0_i32, %c0_i32_0 : i32, i32
  }
  func.func @transform_5(%arg0: i32, %arg1: i32) -> (i32, i32) {
    %c0_i32 = arith.constant 0 : i32
    %c0_i32_0 = arith.constant 0 : i32
    %c0_i32_1 = arith.constant 0 : i32
    return %c0_i32, %c0_i32_0 : i32, i32
  }
  func.func @transform_6(%arg0: i32, %arg1: i32) -> (i32, i32, i32) {
    %c0_i32 = arith.constant 0 : i32
    %c0_i32_0 = arith.constant 0 : i32
    %c0_i32_1 = arith.constant 0 : i32
    return %arg0, %c0_i32, %c0_i32_0 : i32, i32, i32
  }
}

</mosaic_0001>

<llo_original>
// kernel: core_forward.1
$region0: #{core_forward.1}
  #allocation0 [shape = 'u32[]', space=smem, size = 0x4, offset = 0x4, fixed_abs, tag = 'smem constant byte address 0x4 - core index']
  #allocation1 [shape = 'u32[144,128]{1,0:T(1,128)}', space=vmem, size = 0x12000, scoped, tag = 'internal scratch']
  #allocation2 [shape = 'f32[8,1]{1,0:T(8,128)}', space=vmem, size = 0x1000, scoped, tag = 'scratch operand']
  %s0 = inlined_call_operand.vmem [shape: bf16[2,4,512], index: 0, kind: input, shape index: {}]
  %s1 = inlined_call_operand.vmem [shape: f32[1,384], index: 1, kind: input, shape index: {}]
  %s2 = inlined_call_operand.vmem [shape: bf16[8,36], index: 2, kind: input, shape index: {}]
  %s3 = inlined_call_operand.vmem [shape: f32[8,1], index: 3, kind: input, shape index: {}]
  %s4 = inlined_call_operand.vmem [shape: f32[10,8], index: 4, kind: input, shape index: {}]
  %s5 = inlined_call_operand.vmem [shape: f32[10,1], index: 5, kind: input, shape index: {}]
  %s6 = inlined_call_operand.vmem [shape: f32[2,10,1], index: 6, kind: output, shape index: {}]
  %s7 = sld [smem:[#allocation0]]
  $region65: #{core_forward.1} parent=0
    _
  %s9 = ssub.s32 1, %s7
  %s10 = scalar_select 0, %s9, %s7
  loop: start=0, step=1, limit=4
  $region2: #{core_forward.1} parent=0 // loop_pre_header
    _
  $region3: #{core_forward.1} parent=0 // loop_header
    %s12 = sphi 0, %s16
    %p13 = scmp.ge.s32.totalorder %s12, 4
    %s19 = sphi 0, %s31
    %s20 = sphi 0, %s27
    %s21 = sphi 0, %s19
    %s22 = sphi 0, %s20
    %s23 = sphi 0, %s21
    %s24 = sphi 0, %s22
    %s34 = sphi 0, %s36
    %s37 = sphi 0, %s34
    %s38 = sphi 0, %s37
    %s54 = sphi 0, %s38
    %s58 = sphi 0, %s58
    %s60 = sphi 0, %s58
    %s61 = sphi 0, %s60
    %s75 = sphi 0, %s61
    %s79 = sphi 0, %s79
    %s81 = sphi 0, %s79
    %s82 = sphi 0, %s81
    %s96 = sphi 0, %s82
    %s100 = sphi 0, %s100
    %s102 = sphi 0, %s100
    %s103 = sphi 0, %s102
    %s117 = sphi 0, %s103
    %s121 = sphi 0, %s121
    %s123 = sphi 0, %s121
    %s124 = sphi 0, %s123
    %s138 = sphi 0, %s124
    %s142 = sphi 0, %s142
    %s144 = sphi 0, %s142
    %s145 = sphi 0, %s144
    %s159 = sphi 0, %s145
    %s165 = sphi 0, %s167
    %s168 = sphi 0, %s165
    %s169 = sphi 0, %s168
    %s185 = sphi 0, %s169
  $region4: #{core_forward.1} parent=0 // loop_header_branch
    %15 = sbr.rel (%p13) target = $region8
  $region5: #{core_forward.1} parent=0 // loop_body
    %s17 = ssub.s32 %s12, 1
    %s18 = ssub.s32 %s12, 2
    %s25 = sadd.s32 1, %s20
    %p26 = scmp.ge.s32.totalorder %s25, 1
    %s27 = scalar_select %p26, 0, %s25
    %s28 = sadd.s32 1, %s19
    %s29 = scalar_select %p26, %s28, %s19
    %p30 = scmp.ge.s32.totalorder %s29, 2
    %s31 = scalar_select %p30, 0, %s29
    %s32 = ssub.s32 %s19, %s31
    %p33 = scmp.eq.s32.totalorder %s32, 0
    %s35 = sadd.s32 %s34, 1
    %s36 = scalar_select %p33, %s34, %s35
    %p39 = pneg %p33
    %p40 = scmp.eq.s32.totalorder %s12, 1
    %p41 = por %p39, %p40
    %p42 = scmp.ne.s32.totalorder %s34, %s37
    %p43 = scmp.eq.s32.totalorder %s12, 0
    %p44 = por %p42, %p43
    %p45 = scmp.ne.s32.totalorder %s34, %s37
    %p46 = scmp.eq.s32.totalorder %s17, 1
    %p47 = por %p45, %p46
    %p48 = scmp.ne.s32.totalorder %s37, %s38
    %p49 = scmp.eq.s32.totalorder %s17, 0
    %p50 = por %p48, %p49
    %p51 = scmp.ne.s32.totalorder %s37, %s38
    %p52 = scmp.eq.s32.totalorder %s18, 1
    %p53 = por %p51, %p52
    %p55 = scmp.ne.s32.totalorder %s38, %s54
    %p56 = scmp.eq.s32.totalorder %s18, 0
    %p57 = por %p55, %p56
    %s59 = sadd.s32 %s58, 1
    %p62 = scmp.eq.s32.totalorder %s12, 1
    %p63 = scmp.ne.s32.totalorder %s58, %s60
    %p64 = scmp.eq.s32.totalorder %s12, 0
    %p65 = por %p63, %p64
    %p66 = scmp.ne.s32.totalorder %s58, %s60
    %p67 = scmp.eq.s32.totalorder %s17, 1
    %p68 = por %p66, %p67
    %p69 = scmp.ne.s32.totalorder %s60, %s61
    %p70 = scmp.eq.s32.totalorder %s17, 0
    %p71 = por %p69, %p70
    %p72 = scmp.ne.s32.totalorder %s60, %s61
    %p73 = scmp.eq.s32.totalorder %s18, 1
    %p74 = por %p72, %p73
    %p76 = scmp.ne.s32.totalorder %s61, %s75
    %p77 = scmp.eq.s32.totalorder %s18, 0
    %p78 = por %p76, %p77
    %s80 = sadd.s32 %s79, 1
    %p83 = scmp.eq.s32.totalorder %s12, 1
    %p84 = scmp.ne.s32.totalorder %s79, %s81
    %p85 = scmp.eq.s32.totalorder %s12, 0
    %p86 = por %p84, %p85
    %p87 = scmp.ne.s32.totalorder %s79, %s81
    %p88 = scmp.eq.s32.totalorder %s17, 1
    %p89 = por %p87, %p88
    %p90 = scmp.ne.s32.totalorder %s81, %s82
    %p91 = scmp.eq.s32.totalorder %s17, 0
    %p92 = por %p90, %p91
    %p93 = scmp.ne.s32.totalorder %s81, %s82
    %p94 = scmp.eq.s32.totalorder %s18, 1
    %p95 = por %p93, %p94
    %p97 = scmp.ne.s32.totalorder %s82, %s96
    %p98 = scmp.eq.s32.totalorder %s18, 0
    %p99 = por %p97, %p98
    %s101 = sadd.s32 %s100, 1
    %p104 = scmp.eq.s32.totalorder %s12, 1
    %p105 = scmp.ne.s32.totalorder %s100, %s102
    %p106 = scmp.eq.s32.totalorder %s12, 0
    %p107 = por %p105, %p106
    %p108 = scmp.ne.s32.totalorder %s100, %s102
    %p109 = scmp.eq.s32.totalorder %s17, 1
    %p110 = por %p108, %p109
    %p111 = scmp.ne.s32.totalorder %s102, %s103
    %p112 = scmp.eq.s32.totalorder %s17, 0
    %p113 = por %p111, %p112
    %p114 = scmp.ne.s32.totalorder %s102, %s103
    %p115 = scmp.eq.s32.totalorder %s18, 1
    %p116 = por %p114, %p115
    %p118 = scmp.ne.s32.totalorder %s103, %s117
    %p119 = scmp.eq.s32.totalorder %s18, 0
    %p120 = por %p118, %p119
    %s122 = sadd.s32 %s121, 1
    %p125 = scmp.eq.s32.totalorder %s12, 1
    %p126 = scmp.ne.s32.totalorder %s121, %s123
    %p127 = scmp.eq.s32.totalorder %s12, 0
    %p128 = por %p126, %p127
    %p129 = scmp.ne.s32.totalorder %s121, %s123
    %p130 = scmp.eq.s32.totalorder %s17, 1
    %p131 = por %p129, %p130
    %p132 = scmp.ne.s32.totalorder %s123, %s124
    %p133 = scmp.eq.s32.totalorder %s17, 0
    %p134 = por %p132, %p133
    %p135 = scmp.ne.s32.totalorder %s123, %s124
    %p136 = scmp.eq.s32.totalorder %s18, 1
    %p137 = por %p135, %p136
    %p139 = scmp.ne.s32.totalorder %s124, %s138
    %p140 = scmp.eq.s32.totalorder %s18, 0
    %p141 = por %p139, %p140
    %s143 = sadd.s32 %s142, 1
    %p146 = scmp.eq.s32.totalorder %s12, 1
    %p147 = scmp.ne.s32.totalorder %s142, %s144
    %p148 = scmp.eq.s32.totalorder %s12, 0
    %p149 = por %p147, %p148
    %p150 = scmp.ne.s32.totalorder %s142, %s144
    %p151 = scmp.eq.s32.totalorder %s17, 1
    %p152 = por %p150, %p151
    %p153 = scmp.ne.s32.totalorder %s144, %s145
    %p154 = scmp.eq.s32.totalorder %s17, 0
    %p155 = por %p153, %p154
    %p156 = scmp.ne.s32.totalorder %s144, %s145
    %p157 = scmp.eq.s32.totalorder %s18, 1
    %p158 = por %p156, %p157
    %p160 = scmp.ne.s32.totalorder %s145, %s159
    %p161 = scmp.eq.s32.totalorder %s18, 0
    %p162 = por %p160, %p161
    %s163 = ssub.s32 %s19, %s31
    %p164 = scmp.eq.s32.totalorder %s163, 0
    %s166 = sadd.s32 %s165, 1
    %s167 = scalar_select %p164, %s165, %s166
    %p170 = pneg %p164
    %p171 = scmp.eq.s32.totalorder %s12, 1
    %p172 = por %p170, %p171
    %p173 = scmp.ne.s32.totalorder %s165, %s168
    %p174 = scmp.eq.s32.totalorder %s12, 0
    %p175 = por %p173, %p174
    %p176 = scmp.ne.s32.totalorder %s165, %s168
    %p177 = scmp.eq.s32.totalorder %s17, 1
    %p178 = por %p176, %p177
    %p179 = scmp.ne.s32.totalorder %s168, %s169
    %p180 = scmp.eq.s32.totalorder %s17, 0
    %p181 = por %p179, %p180
    %p182 = scmp.ne.s32.totalorder %s168, %s169
    %p183 = scmp.eq.s32.totalorder %s18, 1
    %p184 = por %p182, %p183
    %p186 = scmp.ne.s32.totalorder %s169, %s185
    %p187 = scmp.eq.s32.totalorder %s18, 0
    %p188 = por %p186, %p187
    %p189 = scmp.le.s32.totalorder 1, %s12
    %p190 = scmp.lt.s32.totalorder %s12, 3
    %p191 = pnand %p189, %p190
    %p192 = pneg %p191
    // Predicated region
    $region9: #{core_forward.1} parent=5 // pred_check
      _
    $region10: #{core_forward.1} parent=5 // pred_check_branch
      %194 = sbr.rel (%p191) target = $region12
    $region11: #{core_forward.1} parent=5 // pred_region
      %s195 = ssub.s32 %s12, 1
      // Predicated region
      $region13: #{core_forward.1} parent=11 // pred_check
        %p196 = pneg %p71
      $region14: #{core_forward.1} parent=11 // pred_check_branch
        %198 = sbr.rel (%p196) target = $region16
      $region15: #{core_forward.1} parent=11 // pred_region
        _
      $region16: #{core_forward.1} parent=11 // pred_fallthru
        _
      // Predicated region
      $region17: #{core_forward.1} parent=11 // pred_check
        %p199 = pneg %p92
      $region18: #{core_forward.1} parent=11 // pred_check_branch
        %201 = sbr.rel (%p199) target = $region20
      $region19: #{core_forward.1} parent=11 // pred_region
        _
      $region20: #{core_forward.1} parent=11 // pred_fallthru
        _
      // Predicated region
      $region21: #{core_forward.1} parent=11 // pred_check
        %p202 = pneg %p113
      $region22: #{core_forward.1} parent=11 // pred_check_branch
        %204 = sbr.rel (%p202) target = $region24
      $region23: #{core_forward.1} parent=11 // pred_region
        _
      $region24: #{core_forward.1} parent=11 // pred_fallthru
        _
      // Predicated region
      $region25: #{core_forward.1} parent=11 // pred_check
        %p205 = pneg %p134
      $region26: #{core_forward.1} parent=11 // pred_check_branch
        %207 = sbr.rel (%p205) target = $region28
      $region27: #{core_forward.1} parent=11 // pred_region
        _
      $region28: #{core_forward.1} parent=11 // pred_fallthru
        _
      // Predicated region
      $region29: #{core_forward.1} parent=11 // pred_check
        %p208 = pneg %p155
      $region30: #{core_forward.1} parent=11 // pred_check_branch
        %210 = sbr.rel (%p208) target = $region32
      $region31: #{core_forward.1} parent=11 // pred_region
        _
      $region32: #{core_forward.1} parent=11 // pred_fallthru
        _
    $region12: #{core_forward.1} parent=5 // pred_fallthru
      _
    %p211 = scmp.lt.s32.totalorder %s12, 2
    // Predicated region
    $region33: #{core_forward.1} parent=5 // pred_check
      %p212 = pneg %p211
    $region34: #{core_forward.1} parent=5 // pred_check_branch
      %214 = sbr.rel (%p212) target = $region36
    $region35: #{core_forward.1} parent=5 // pred_region
      // Predicated region
      $region37: #{core_forward.1} parent=35 // pred_check
        %p215 = pneg %p44
      $region38: #{core_forward.1} parent=35 // pred_check_branch
        %217 = sbr.rel (%p215) target = $region40
      $region39: #{core_forward.1} parent=35 // pred_region
        %p218 = scmp.lt.s32.totalorder %s19, 1
        %s219 = scalar_select %p218, %s19, 1
        %s220 = smul.addr %s219, 4
        %s221 = smul.addr %s220, 2
        %s222 = scalar_lea.vmem %s0, %s221
      $region40: #{core_forward.1} parent=35 // pred_fallthru
        _
    $region36: #{core_forward.1} parent=5 // pred_fallthru
      _
    %p223 = scmp.le.s32.totalorder 1, %s12
    %p224 = scmp.lt.s32.totalorder %s12, 3
    %p225 = pnand %p223, %p224
    %p226 = pneg %p225
    // Predicated region
    $region41: #{core_forward.1} parent=5 // pred_check
      _
    $region42: #{core_forward.1} parent=5 // pred_check_branch
      %228 = sbr.rel (%p225) target = $region44
    $region43: #{core_forward.1} parent=5 // pred_region
      %s229 = ssub.s32 %s12, 1
      %p230 = scmp.lt.s32.totalorder %s21, 1
      %s231 = scalar_select %p230, %s21, 1
      %s232 = smul.addr %s231, 4
      %s233 = smul.addr %s232, 2
      %s234 = scalar_lea.vmem %s0, %s233
      %p235 = pneg %p50
      %p236 = pneg %p47
      %p237 = pneg %p71
      %p238 = pneg %p68
      %p239 = pneg %p92
      %p240 = pneg %p89
      %p241 = pneg %p113
      %p242 = pneg %p110
      %p243 = pneg %p134
      %p244 = pneg %p131
      %p245 = pneg %p155
      %p246 = pneg %p152
      %p247 = pneg %p181
      %p248 = pneg %p178
      %p249 = scmp.lt.s32.totalorder %s21, 1
      %s250 = scalar_select %p249, %s21, 1
      %s251 = smul.addr %s250, 2
      %s252 = smul.addr %s251, 8
      %s253 = scalar_lea.vmem %s6, %s252
      %p254 = scmp.lt.s32.totalorder %s21, 1
      %s255 = scalar_select %p254, %s21, 1
      %s256 = smul.addr %s255, 4
      %s257 = smul.addr %s256, 2
      %s258 = scalar_lea.vmem %s0, %s257
      %p259 = scmp.lt.s32.totalorder %s21, 1
      %s260 = scalar_select %p259, %s21, 1
      %s261 = smul.addr %s260, 2
      %s262 = smul.addr %s261, 8
      %s263 = scalar_lea.vmem %s6, %s262
      %p265 = scmp.eq.s32.totalorder %s22, 0
      // Predicated region
      $region45: #{core_forward.1} parent=43 // pred_check
        %p266 = pneg %p265
      $region46: #{core_forward.1} parent=43 // pred_check_branch
        %268 = sbr.rel (%p266) target = $region48
      $region47: #{core_forward.1} parent=43 // pred_region
        %vm269 = vcmask 7168
        %270 = vst.msk [vmem:[#allocation2] sm:$0xff] %vm269, 0.0
      $region48: #{core_forward.1} parent=43 // pred_fallthru
        _
      %s271 = smul.u32 %s22, 384
      %s272 = sshra.s32 %s271, 7
      %s273 = sand.u32 %s271, 127
      %s274 = smul.addr %s272, 2
      %s275 = scalar_lea.vmem %s258, %s274
      %v276 = vld [vmem:[%s275] sm:$0xff]
      %v278 = vcombine.high %v276, %v276
      %v280 = vunpack.c.l.s4 1983009808
      %v281 = vunpack.c.0.s8 %v280
      %v282 = vlaneseq
      %v283 = vshrl.u32 %v282, 7
      %v284 = vsub.s32 %v281, %v283
      %v285 = vrot.slane %v276, %v284
      %v287 = vunpack.c.l.s4 1983009808
      %v288 = vunpack.c.0.s8 %v287
      %v289 = vlaneseq
      %v290 = vshrl.u32 %v289, 7
      %v291 = vsub.s32 %v288, %v290
      %v292 = vrot.slane %v278, %v291
      %v293 = vcombine.high %v285, %v285
      %v294 = vcombine.low %v276, %v276
      %v296 = vunpack.c.l.s4 1983009808
      %v297 = vunpack.c.0.s8 %v296
      %v298 = vlaneseq
      %v299 = vshrl.u32 %v298, 7
      %v300 = vsub.s32 %v297, %v299
      %v301 = vrot.slane %v294, %v300
      %v302 = vcombine.high %v301, %v301
      %303 = vrot.lane.b32.xlu0 %v301, 127
      %v304 = vpop.permute.xlu0 %303
      %305 = vrot.lane.b32.xlu0 %v302, 127
      %v306 = vpop.permute.xlu0 %305
      %307 = vrot.lane.b32.xlu0 %v285, 127
      %v308 = vpop.permute.xlu0 %307
      %309 = vrot.lane.b32.xlu0 %v293, 127
      %v310 = vpop.permute.xlu0 %309
      %vm311 = vcmask 1039360
      %v312 = vsel %vm311, %v304, %v306
      %v313 = vsel %vm311, %v306, %v308
      %v314 = vsel %vm311, %v308, %v310
      %v315 = vcombine.low %v285, %v285
      %v316 = vcombine.low %v292, %v292
      %317 = vrot.lane.b32.xlu0 %v315, 126
      %v318 = vpop.permute.xlu0 %317
      %319 = vrot.lane.b32.xlu0 %v285, 126
      %v320 = vpop.permute.xlu0 %319
      %321 = vrot.lane.b32.xlu0 %v316, 126
      %v322 = vpop.permute.xlu0 %321
      %323 = vrot.lane.b32.xlu0 %v292, 126
      %v324 = vpop.permute.xlu0 %323
      %vm325 = vcmask 1031168
      %v326 = vsel %vm325, %v318, %v320
      %v327 = vsel %vm325, %v320, %v322
      %v328 = vsel %vm325, %v322, %v324
      %v329 = vcombine.low %v301, %v301
      %330 = vrot.lane.b32.xlu0 %v329, 110
      %v331 = vpop.permute.xlu0 %330
      %332 = vrot.lane.b32.xlu0 %v301, 110
      %v333 = vpop.permute.xlu0 %332
      %334 = vrot.lane.b32.xlu0 %v315, 110
      %v335 = vpop.permute.xlu0 %334
      %336 = vrot.lane.b32.xlu0 %v285, 110
      %v337 = vpop.permute.xlu0 %336
      %vm338 = vcmask 900096
      %v339 = vsel %vm338, %v331, %v333
      %v340 = vsel %vm338, %v333, %v335
      %v341 = vsel %vm338, %v335, %v337
      %v342 = vcombine.high %v292, %v292
      %343 = vrot.lane.b32.xlu0 %v285, 109
      %v344 = vpop.permute.xlu0 %343
      %345 = vrot.lane.b32.xlu0 %v293, 109
      %v346 = vpop.permute.xlu0 %345
      %347 = vrot.lane.b32.xlu0 %v292, 109
      %v348 = vpop.permute.xlu0 %347
      %349 = vrot.lane.b32.xlu0 %v342, 109
      %v350 = vpop.permute.xlu0 %349
      %vm351 = vcmask 891904
      %v352 = vsel %vm351, %v344, %v346
      %v353 = vsel %vm351, %v346, %v348
      %v354 = vsel %vm351, %v348, %v350
      %355 = vrot.lane.b32.xlu0 %v301, 108
      %v356 = vpop.permute.xlu0 %355
      %357 = vrot.lane.b32.xlu0 %v302, 108
      %v358 = vpop.permute.xlu0 %357
      %359 = vrot.lane.b32.xlu0 %v285, 108
      %v360 = vpop.permute.xlu0 %359
      %361 = vrot.lane.b32.xlu0 %v293, 108
      %v362 = vpop.permute.xlu0 %361
      %vm363 = vcmask 883712
      %v364 = vsel %vm363, %v356, %v358
      %v365 = vsel %vm363, %v358, %v360
      %v366 = vsel %vm363, %v360, %v362
      %367 = vrot.lane.b32.xlu0 %v315, 92
      %v368 = vpop.permute.xlu0 %367
      %369 = vrot.lane.b32.xlu0 %v285, 92
      %v370 = vpop.permute.xlu0 %369
      %371 = vrot.lane.b32.xlu0 %v316, 92
      %v372 = vpop.permute.xlu0 %371
      %373 = vrot.lane.b32.xlu0 %v292, 92
      %v374 = vpop.permute.xlu0 %373
      %vm375 = vcmask 752640
      %v376 = vsel %vm375, %v368, %v370
      %v377 = vsel %vm375, %v370, %v372
      %v378 = vsel %vm375, %v372, %v374
      %379 = vrot.lane.b32.xlu0 %v329, 91
      %v380 = vpop.permute.xlu0 %379
      %381 = vrot.lane.b32.xlu0 %v301, 91
      %v382 = vpop.permute.xlu0 %381
      %383 = vrot.lane.b32.xlu0 %v315, 91
      %v384 = vpop.permute.xlu0 %383
      %385 = vrot.lane.b32.xlu0 %v285, 91
      %v386 = vpop.permute.xlu0 %385
      %vm387 = vcmask 744448
      %v388 = vsel %vm387, %v380, %v382
      %v389 = vsel %vm387, %v382, %v384
      %v390 = vsel %vm387, %v384, %v386
      %391 = vrot.lane.b32.xlu0 %v285, 90
      %v392 = vpop.permute.xlu0 %391
      %393 = vrot.lane.b32.xlu0 %v293, 90
      %v394 = vpop.permute.xlu0 %393
      %395 = vrot.lane.b32.xlu0 %v292, 90
      %v396 = vpop.permute.xlu0 %395
      %397 = vrot.lane.b32.xlu0 %v342, 90
      %v398 = vpop.permute.xlu0 %397
      %vm399 = vcmask 736256
      %v400 = vsel %vm399, %v392, %v394
      %v401 = vsel %vm399, %v394, %v396
      %v402 = vsel %vm399, %v396, %v398
      %vm403 = vcmask 1041408
      %v406 = vsel %vm403, %v285, %v312
      %v409 = vsel %vm403, %v293, %v313
      %v412 = vsel %vm403, %v292, %v314
      %vm413 = vcmask 1043456
      %v415 = vsel %vm413, %v406, %v326
      %v417 = vsel %vm413, %v409, %v327
      %v419 = vsel %vm413, %v412, %v328
      %vm420 = vcmask 1045504
      %v422 = vsel %vm420, %v415, %v339
      %v425 = vsel %vm420, %v417, %v340
      %v428 = vsel %vm420, %v419, %v341
      %v432 = vsel %vm403, %v352, %v364
      %v435 = vsel %vm403, %v353, %v365
      %v438 = vsel %vm403, %v354, %v366
      %v440 = vsel %vm413, %v432, %v376
      %v442 = vsel %vm413, %v435, %v377
      %v444 = vsel %vm413, %v438, %v378
      %v446 = vsel %vm420, %v440, %v388
      %v449 = vsel %vm420, %v442, %v389
      %v452 = vsel %vm420, %v444, %v390
      %v454 = vld [vmem:[%s2] sm:$0xf]
      %v455 = vld [vmem:[%s3] sm:$0xff]
      %457 = vset.pattern.permute.xlu0 0
      %458 = vperm.xlu0 %457, %v455
      %v459 = vpop.permute.xlu0 %458
      %vm461 = vcmask 293888
      %v463 = vsel %vm461, %v454, 0
      %v466 = vsel %vm403, %v400, 0
      %v469 = vsel %vm403, %v401, 0
      %v472 = vsel %vm403, %v402, 0
      %474 = vmatprep.subr.bf16.mxu0 %v425
      %475 = vmatpush1.bf16.msra.mxu0 %v422
      %476 = vmatprep.subr.bf16.mxu0 %v449
      %477 = vmatpush1.bf16.msra.mxu0 %v446
      %478 = vmatprep.subr.bf16.mxu0 %v469
      %479 = vmatpush1.bf16.msra.mxu0 %v466
      %480 = vmatprep.subr.bf16.mxu0 0
      %481 = vmatpush1.bf16.msra.mxu0 0
      %482 = vmatprep.subr.bf16.mxu0 0
      %483 = vmatpush1.bf16.msra.mxu0 0
      %484 = vmatprep.subr.bf16.mxu0 0
      %485 = vmatpush1.bf16.msra.mxu0 0
      %486 = vmatprep.subr.bf16.mxu0 0
      %487 = vmatpush1.bf16.msra.mxu0 0
      %488 = vmatprep.subr.bf16.mxu0 0
      %489 = vmatpush1.bf16.msra.mxu0 0
      %490 = vmatprep.subr.bf16.mxu0 0
      %491 = vmatpush1.bf16.msra.mxu0 0
      %492 = vmatprep.subr.bf16.mxu0 0
      %493 = vmatpush1.bf16.msra.mxu0 0
      %494 = vmatprep.subr.bf16.mxu0 0
      %495 = vmatpush1.bf16.msra.mxu0 0
      %496 = vmatprep.subr.bf16.mxu0 0
      %497 = vmatpush1.bf16.msra.mxu0 0
      %498 = vmatprep.subr.bf16.mxu0 0
      %499 = vmatpush1.bf16.msra.mxu0 0
      %500 = vmatprep.subr.bf16.mxu0 0
      %501 = vmatpush1.bf16.msra.mxu0 0
      %502 = vmatprep.subr.bf16.mxu0 0
      %503 = vmatpush1.bf16.msra.mxu0 0
      %504 = vmatprep.subr.bf16.mxu0 0
      %505 = vmatpush1.bf16.msra.mxu0 0
      %506 = vmatprep.mubr.bf16.mxu0 0
      %507 = vmatmul.mubr.bf16.gmra.mrb[0].mxu0 %v463
      %v508 = vpop.f32.mrb[0].mxu0
      %v509 = vadd.f32 %v459, %v508
      %v510 = vpop.f32.mrb[0].mxu0
      %v511 = vadd.f32 %v459, %v510
      %v512 = vpop.f32.mrb[0].mxu0
      %v513 = vpop.f32.mrb[0].mxu0
      %514 = vdwg.mxu0
      %515 = vmatprep.subr.bf16.mxu0 0
      %516 = vmatpush1.bf16.msra.mxu0 %v428
      %517 = vmatprep.subr.bf16.mxu0 0
      %518 = vmatpush1.bf16.msra.mxu0 %v452
      %519 = vmatprep.subr.bf16.mxu0 0
      %520 = vmatpush1.bf16.msra.mxu0 %v472
      %521 = vmatprep.subr.bf16.mxu0 0
      %522 = vmatpush1.bf16.msra.mxu0 0
      %523 = vmatprep.subr.bf16.mxu0 0
      %524 = vmatpush1.bf16.msra.mxu0 0
      %525 = vmatprep.subr.bf16.mxu0 0
      %526 = vmatpush1.bf16.msra.mxu0 0
      %527 = vmatprep.subr.bf16.mxu0 0
      %528 = vmatpush1.bf16.msra.mxu0 0
      %529 = vmatprep.subr.bf16.mxu0 0
      %530 = vmatpush1.bf16.msra.mxu0 0
      %531 = vmatprep.subr.bf16.mxu0 0
      %532 = vmatpush1.bf16.msra.mxu0 0
      %533 = vmatprep.subr.bf16.mxu0 0
      %534 = vmatpush1.bf16.msra.mxu0 0
      %535 = vmatprep.subr.bf16.mxu0 0
      %536 = vmatpush1.bf16.msra.mxu0 0
      %537 = vmatprep.subr.bf16.mxu0 0
      %538 = vmatpush1.bf16.msra.mxu0 0
      %539 = vmatprep.subr.bf16.mxu0 0
      %540 = vmatpush1.bf16.msra.mxu0 0
      %541 = vmatprep.subr.bf16.mxu0 0
      %542 = vmatpush1.bf16.msra.mxu0 0
      %543 = vmatprep.subr.bf16.mxu0 0
      %544 = vmatpush1.bf16.msra.mxu0 0
      %545 = vmatprep.subr.bf16.mxu0 0
      %546 = vmatpush1.bf16.msra.mxu0 0
      %547 = vmatprep.mubr.bf16.mxu0 0
      %548 = vmatmul.mubr.bf16.gmra.mrb[0].mxu0 %v463
      %v549 = vpop.f32.mrb[0].mxu0
      %v550 = vadd.f32 %v459, %v549
      %v551 = vpop.f32.mrb[0].mxu0
      %v552 = vpop.f32.mrb[0].mxu0
      %v553 = vpop.f32.mrb[0].mxu0
      %554 = vdwg.mxu0
      %v555 = vmax.f32 %v509, 0.0
      %v556 = vmax.f32 %v511, 0.0
      %v557 = vmax.f32 %v550, 0.0
      %s558 = scalar_lea.vmem %s1, %s272
      %v559 = vld [vmem:[%s558] sm:$0x7]
      %v560 = vld [vmem:[#allocation2] sm:$0xff]
      %v562 = vlaneseq
      %v563 = vshrl.u32 %v562, 7
      %v564 = vsub.s32 0, %v563
      %v565 = vrot.slane %v559, %v564
      %v566 = vlaneseq
      %v567 = vshrl.u32 %v566, 7
      %v568 = vsub.s32 1, %v567
      %v569 = vrot.slane %v559, %v568
      %v570 = vlaneseq
      %v571 = vshrl.u32 %v570, 7
      %v572 = vsub.s32 2, %v571
      %v573 = vrot.slane %v559, %v572
      %v577 = vmul.f32 %v555, %v565
      %v578 = vmul.f32 %v556, %v569
      %v579 = vmul.f32 %v557, %v573
      %v580 = vadd.f32 %v577, %v578
      %v581 = vadd.f32 %v580, %v579
      %582 = vadd.xlane.f32.xlu0 %v581
      %v583 = vpop.xlane.xlu0 %582
      %v584 = vadd.f32 %v560, %v583
      %vm585 = vcmask 7168
      %586 = vst.msk [vmem:[#allocation2] sm:$0xff] %vm585, %v584
      // Predicated region
      $region49: #{core_forward.1} parent=43 // pred_check
        %p587 = pneg %p265
      $region50: #{core_forward.1} parent=43 // pred_check_branch
        %589 = sbr.rel (%p587) target = $region52
      $region51: #{core_forward.1} parent=43 // pred_region
        %v590 = vld [vmem:[%s4] sm:$0xff]
        %v591 = vld [vmem:[%s4 + $0x8] sm:$0x3]
        %v592 = vld [vmem:[#allocation2] sm:$0xff]
        %v593 = vld [vmem:[%s5] sm:$0xff]
        %v594 = vld [vmem:[%s5 + $0x8] sm:$0x3]
        %vm595 = vcmask 64512
        %v597 = vsel %vm595, %v590, 0
        %v600 = vsel %vm595, %v591, 0
        %602 = vmatprep.subr.mxu0 0.0
        %v603 = vand.u32 %v592, 4294901760
        %604 = vmatpush1.msra.mxu0 %v603
        %605 = vmatprep.subr.mxu0 0.0
        %606 = vmatpush1.msra.mxu0 0.0
        %607 = vmatprep.subr.mxu0 0.0
        %608 = vmatpush1.msra.mxu0 0.0
        %609 = vmatprep.subr.mxu0 0.0
        %610 = vmatpush1.msra.mxu0 0.0
        %611 = vmatprep.subr.mxu0 0.0
        %612 = vmatpush1.msra.mxu0 0.0
        %613 = vmatprep.subr.mxu0 0.0
        %614 = vmatpush1.msra.mxu0 0.0
        %615 = vmatprep.subr.mxu0 0.0
        %616 = vmatpush1.msra.mxu0 0.0
        %617 = vmatprep.subr.mxu0 0.0
        %618 = vmatpush1.msra.mxu0 0.0
        %619 = vmatprep.subr.mxu0 0.0
        %620 = vmatpush1.msra.mxu0 0.0
        %621 = vmatprep.subr.mxu0 0.0
        %622 = vmatpush1.msra.mxu0 0.0
        %623 = vmatprep.subr.mxu0 0.0
        %624 = vmatpush1.msra.mxu0 0.0
        %625 = vmatprep.subr.mxu0 0.0
        %626 = vmatpush1.msra.mxu0 0.0
        %627 = vmatprep.subr.mxu0 0.0
        %628 = vmatpush1.msra.mxu0 0.0
        %629 = vmatprep.subr.mxu0 0.0
        %630 = vmatpush1.msra.mxu0 0.0
        %631 = vmatprep.subr.mxu0 0.0
        %632 = vmatpush1.msra.mxu0 0.0
        %633 = vmatprep.subr.mxu0 0.0
        %634 = vmatpush1.msra.mxu0 0.0
        %635 = vmatprep.subr.mxu0 0.0
        %636 = vmatpush1.msra.mxu0 0.0
        %637 = vmatprep.subr.mxu0 0.0
        %638 = vmatpush1.msra.mxu0 0.0
        %639 = vmatprep.subr.mxu0 0.0
        %640 = vmatpush1.msra.mxu0 0.0
        %641 = vmatprep.subr.mxu0 0.0
        %642 = vmatpush1.msra.mxu0 0.0
        %643 = vmatprep.subr.mxu0 0.0
        %644 = vmatpush1.msra.mxu0 0.0
        %645 = vmatprep.subr.mxu0 0.0
        %646 = vmatpush1.msra.mxu0 0.0
        %647 = vmatprep.subr.mxu0 0.0
        %648 = vmatpush1.msra.mxu0 0.0
        %649 = vmatprep.subr.mxu0 0.0
        %650 = vmatpush1.msra.mxu0 0.0
        %651 = vmatprep.subr.mxu0 0.0
        %652 = vmatpush1.msra.mxu0 0.0
        %653 = vmatprep.subr.mxu0 0.0
        %654 = vmatpush1.msra.mxu0 0.0
        %655 = vmatprep.subr.mxu0 0.0
        %656 = vmatpush1.msra.mxu0 0.0
        %657 = vmatprep.subr.mxu0 0.0
        %658 = vmatpush1.msra.mxu0 0.0
        %659 = vmatprep.subr.mxu0 0.0
        %660 = vmatpush1.msra.mxu0 0.0
        %661 = vmatprep.subr.mxu0 0.0
        %662 = vmatpush1.msra.mxu0 0.0
        %663 = vmatprep.subr.mxu0 0.0
        %664 = vmatpush1.msra.mxu0 0.0
        %665 = vmatprep.subr.mxu0 0.0
        %666 = vmatpush1.msra.mxu0 0.0
        %667 = vmatprep.mubr.f32.mxu0 0.0
        %v668 = vand.u32 %v597, 4294901760
        %v669 = vsub.f32 %v597, %v668
        %v670 = vand.u32 %v669, 4294901760
        %v671 = vsub.f32 %v669, %v670
        %v672 = vand.u32 %v671, 4294901760
        %673 = vmatmul.mubr.f32.gmra.mrb[0].mxu0 %v672
        %v674 = vpop.f32.mrb[0].mxu0
        %v675 = vadd.f32 %v593, %v674
        %v676 = vpop.f32.mrb[0].mxu0
        %677 = vmatprep.mubr.f32.mxu0 0.0
        %v678 = vand.u32 %v600, 4294901760
        %v679 = vsub.f32 %v600, %v678
        %v680 = vand.u32 %v679, 4294901760
        %v681 = vsub.f32 %v679, %v680
        %v682 = vand.u32 %v681, 4294901760
        %683 = vmatmul.mubr.f32.gmra.mrb[0].mxu0 %v682
        %v684 = vpop.f32.mrb[0].mxu0
        %v685 = vadd.f32 %v594, %v684
        %v686 = vpop.f32.mrb[0].mxu0
        %687 = vdwg.mxu0
        %688 = vmatprep.subr.mxu0 0.0
        %v689 = vand.u32 %v592, 4294901760
        %v690 = vsub.f32 %v592, %v689
        %v691 = vand.u32 %v690, 4294901760
        %v692 = vsub.f32 %v690, %v691
        %v693 = vand.u32 %v692, 4294901760
        %694 = vmatpush1.msra.mxu0 %v693
        %695 = vmatprep.subr.mxu0 0.0
        %696 = vmatpush1.msra.mxu0 0.0
        %697 = vmatprep.subr.mxu0 0.0
        %698 = vmatpush1.msra.mxu0 0.0
        %699 = vmatprep.subr.mxu0 0.0
        %700 = vmatpush1.msra.mxu0 0.0
        %701 = vmatprep.subr.mxu0 0.0
        %702 = vmatpush1.msra.mxu0 0.0
        %703 = vmatprep.subr.mxu0 0.0
        %704 = vmatpush1.msra.mxu0 0.0
        %705 = vmatprep.subr.mxu0 0.0
        %706 = vmatpush1.msra.mxu0 0.0
        %707 = vmatprep.subr.mxu0 0.0
        %708 = vmatpush1.msra.mxu0 0.0
        %709 = vmatprep.subr.mxu0 0.0
        %710 = vmatpush1.msra.mxu0 0.0
        %711 = vmatprep.subr.mxu0 0.0
        %712 = vmatpush1.msra.mxu0 0.0
        %713 = vmatprep.subr.mxu0 0.0
        %714 = vmatpush1.msra.mxu0 0.0
        %715 = vmatprep.subr.mxu0 0.0
        %716 = vmatpush1.msra.mxu0 0.0
        %717 = vmatprep.subr.mxu0 0.0
        %718 = vmatpush1.msra.mxu0 0.0
        %719 = vmatprep.subr.mxu0 0.0
        %720 = vmatpush1.msra.mxu0 0.0
        %721 = vmatprep.subr.mxu0 0.0
        %722 = vmatpush1.msra.mxu0 0.0
        %723 = vmatprep.subr.mxu0 0.0
        %724 = vmatpush1.msra.mxu0 0.0
        %725 = vmatprep.subr.mxu0 0.0
        %726 = vmatpush1.msra.mxu0 0.0
        %727 = vmatprep.subr.mxu0 0.0
        %728 = vmatpush1.msra.mxu0 0.0
        %729 = vmatprep.subr.mxu0 0.0
        %730 = vmatpush1.msra.mxu0 0.0
        %731 = vmatprep.subr.mxu0 0.0
        %732 = vmatpush1.msra.mxu0 0.0
        %733 = vmatprep.subr.mxu0 0.0
        %734 = vmatpush1.msra.mxu0 0.0
        %735 = vmatprep.subr.mxu0 0.0
        %736 = vmatpush1.msra.mxu0 0.0
        %737 = vmatprep.subr.mxu0 0.0
        %738 = vmatpush1.msra.mxu0 0.0
        %739 = vmatprep.subr.mxu0 0.0
        %740 = vmatpush1.msra.mxu0 0.0
        %741 = vmatprep.subr.mxu0 0.0
        %742 = vmatpush1.msra.mxu0 0.0
        %743 = vmatprep.subr.mxu0 0.0
        %744 = vmatpush1.msra.mxu0 0.0
        %745 = vmatprep.subr.mxu0 0.0
        %746 = vmatpush1.msra.mxu0 0.0
        %747 = vmatprep.subr.mxu0 0.0
        %748 = vmatpush1.msra.mxu0 0.0
        %749 = vmatprep.subr.mxu0 0.0
        %750 = vmatpush1.msra.mxu0 0.0
        %751 = vmatprep.subr.mxu0 0.0
        %752 = vmatpush1.msra.mxu0 0.0
        %753 = vmatprep.subr.mxu0 0.0
        %754 = vmatpush1.msra.mxu0 0.0
        %755 = vmatprep.subr.mxu0 0.0
        %756 = vmatpush1.msra.mxu0 0.0
        %757 = vmatprep.mubr.f32.mxu0 0.0
        %v758 = vand.u32 %v597, 4294901760
        %759 = vmatmul.mubr.f32.gmra.mrb[0].mxu0 %v758
        %v760 = vpop.f32.mrb[0].mxu0
        %v761 = vadd.f32 %v675, %v760
        %v762 = vpop.f32.mrb[0].mxu0
        %763 = vmatprep.mubr.f32.mxu0 0.0
        %v764 = vand.u32 %v600, 4294901760
        %765 = vmatmul.mubr.f32.gmra.mrb[0].mxu0 %v764
        %v766 = vpop.f32.mrb[0].mxu0
        %v767 = vadd.f32 %v685, %v766
        %v768 = vpop.f32.mrb[0].mxu0
        %769 = vdwg.mxu0
        %770 = vmatprep.subr.mxu0 0.0
        %v771 = vand.u32 %v592, 4294901760
        %v772 = vsub.f32 %v592, %v771
        %773 = vmatpush1.msra.mxu0 %v772
        %774 = vmatprep.subr.mxu0 0.0
        %775 = vmatpush1.msra.mxu0 0.0
        %776 = vmatprep.subr.mxu0 0.0
        %777 = vmatpush1.msra.mxu0 0.0
        %778 = vmatprep.subr.mxu0 0.0
        %779 = vmatpush1.msra.mxu0 0.0
        %780 = vmatprep.subr.mxu0 0.0
        %781 = vmatpush1.msra.mxu0 0.0
        %782 = vmatprep.subr.mxu0 0.0
        %783 = vmatpush1.msra.mxu0 0.0
        %784 = vmatprep.subr.mxu0 0.0
        %785 = vmatpush1.msra.mxu0 0.0
        %786 = vmatprep.subr.mxu0 0.0
        %787 = vmatpush1.msra.mxu0 0.0
        %788 = vmatprep.subr.mxu0 0.0
        %789 = vmatpush1.msra.mxu0 0.0
        %790 = vmatprep.subr.mxu0 0.0
        %791 = vmatpush1.msra.mxu0 0.0
        %792 = vmatprep.subr.mxu0 0.0
        %793 = vmatpush1.msra.mxu0 0.0
        %794 = vmatprep.subr.mxu0 0.0
        %795 = vmatpush1.msra.mxu0 0.0
        %796 = vmatprep.subr.mxu0 0.0
        %797 = vmatpush1.msra.mxu0 0.0
        %798 = vmatprep.subr.mxu0 0.0
        %799 = vmatpush1.msra.mxu0 0.0
        %800 = vmatprep.subr.mxu0 0.0
        %801 = vmatpush1.msra.mxu0 0.0
        %802 = vmatprep.subr.mxu0 0.0
        %803 = vmatpush1.msra.mxu0 0.0
        %804 = vmatprep.subr.mxu0 0.0
        %805 = vmatpush1.msra.mxu0 0.0
        %806 = vmatprep.subr.mxu0 0.0
        %807 = vmatpush1.msra.mxu0 0.0
        %808 = vmatprep.subr.mxu0 0.0
        %809 = vmatpush1.msra.mxu0 0.0
        %810 = vmatprep.subr.mxu0 0.0
        %811 = vmatpush1.msra.mxu0 0.0
        %812 = vmatprep.subr.mxu0 0.0
        %813 = vmatpush1.msra.mxu0 0.0
        %814 = vmatprep.subr.mxu0 0.0
        %815 = vmatpush1.msra.mxu0 0.0
        %816 = vmatprep.subr.mxu0 0.0
        %817 = vmatpush1.msra.mxu0 0.0
        %818 = vmatprep.subr.mxu0 0.0
        %819 = vmatpush1.msra.mxu0 0.0
        %820 = vmatprep.subr.mxu0 0.0
        %821 = vmatpush1.msra.mxu0 0.0
        %822 = vmatprep.subr.mxu0 0.0
        %823 = vmatpush1.msra.mxu0 0.0
        %824 = vmatprep.subr.mxu0 0.0
        %825 = vmatpush1.msra.mxu0 0.0
        %826 = vmatprep.subr.mxu0 0.0
        %827 = vmatpush1.msra.mxu0 0.0
        %828 = vmatprep.subr.mxu0 0.0
        %829 = vmatpush1.msra.mxu0 0.0
        %830 = vmatprep.subr.mxu0 0.0
        %831 = vmatpush1.msra.mxu0 0.0
        %832 = vmatprep.subr.mxu0 0.0
        %833 = vmatpush1.msra.mxu0 0.0
        %834 = vmatprep.subr.mxu0 0.0
        %835 = vmatpush1.msra.mxu0 0.0
        %836 = vmatprep.mubr.f32.mxu0 0.0
        %v837 = vand.u32 %v597, 4294901760
        %v838 = vsub.f32 %v597, %v837
        %839 = vmatmul.mubr.f32.gmra.mrb[0].mxu0 %v838
        %v840 = vpop.f32.mrb[0].mxu0
        %v841 = vadd.f32 %v761, %v840
        %v842 = vpop.f32.mrb[0].mxu0
        %843 = vmatprep.mubr.f32.mxu0 0.0
        %v844 = vand.u32 %v600, 4294901760
        %v845 = vsub.f32 %v600, %v844
        %846 = vmatmul.mubr.f32.gmra.mrb[0].mxu0 %v845
        %v847 = vpop.f32.mrb[0].mxu0
        %v848 = vadd.f32 %v767, %v847
        %v849 = vpop.f32.mrb[0].mxu0
        %850 = vdwg.mxu0
        %851 = vmatprep.subr.mxu0 0.0
        %v852 = vand.u32 %v592, 4294901760
        %853 = vmatpush1.msra.mxu0 %v852
        %854 = vmatprep.subr.mxu0 0.0
        %855 = vmatpush1.msra.mxu0 0.0
        %856 = vmatprep.subr.mxu0 0.0
        %857 = vmatpush1.msra.mxu0 0.0
        %858 = vmatprep.subr.mxu0 0.0
        %859 = vmatpush1.msra.mxu0 0.0
        %860 = vmatprep.subr.mxu0 0.0
        %861 = vmatpush1.msra.mxu0 0.0
        %862 = vmatprep.subr.mxu0 0.0
        %863 = vmatpush1.msra.mxu0 0.0
        %864 = vmatprep.subr.mxu0 0.0
        %865 = vmatpush1.msra.mxu0 0.0
        %866 = vmatprep.subr.mxu0 0.0
        %867 = vmatpush1.msra.mxu0 0.0
        %868 = vmatprep.subr.mxu0 0.0
        %869 = vmatpush1.msra.mxu0 0.0
        %870 = vmatprep.subr.mxu0 0.0
        %871 = vmatpush1.msra.mxu0 0.0
        %872 = vmatprep.subr.mxu0 0.0
        %873 = vmatpush1.msra.mxu0 0.0
        %874 = vmatprep.subr.mxu0 0.0
        %875 = vmatpush1.msra.mxu0 0.0
        %876 = vmatprep.subr.mxu0 0.0
        %877 = vmatpush1.msra.mxu0 0.0
        %878 = vmatprep.subr.mxu0 0.0
        %879 = vmatpush1.msra.mxu0 0.0
        %880 = vmatprep.subr.mxu0 0.0
        %881 = vmatpush1.msra.mxu0 0.0
        %882 = vmatprep.subr.mxu0 0.0
        %883 = vmatpush1.msra.mxu0 0.0
        %884 = vmatprep.subr.mxu0 0.0
        %885 = vmatpush1.msra.mxu0 0.0
        %886 = vmatprep.subr.mxu0 0.0
        %887 = vmatpush1.msra.mxu0 0.0
        %888 = vmatprep.subr.mxu0 0.0
        %889 = vmatpush1.msra.mxu0 0.0
        %890 = vmatprep.subr.mxu0 0.0
        %891 = vmatpush1.msra.mxu0 0.0
        %892 = vmatprep.subr.mxu0 0.0
        %893 = vmatpush1.msra.mxu0 0.0
        %894 = vmatprep.subr.mxu0 0.0
        %895 = vmatpush1.msra.mxu0 0.0
        %896 = vmatprep.subr.mxu0 0.0
        %897 = vmatpush1.msra.mxu0 0.0
        %898 = vmatprep.subr.mxu0 0.0
        %899 = vmatpush1.msra.mxu0 0.0
        %900 = vmatprep.subr.mxu0 0.0
        %901 = vmatpush1.msra.mxu0 0.0
        %902 = vmatprep.subr.mxu0 0.0
        %903 = vmatpush1.msra.mxu0 0.0
        %904 = vmatprep.subr.mxu0 0.0
        %905 = vmatpush1.msra.mxu0 0.0
        %906 = vmatprep.subr.mxu0 0.0
        %907 = vmatpush1.msra.mxu0 0.0
        %908 = vmatprep.subr.mxu0 0.0
        %909 = vmatpush1.msra.mxu0 0.0
        %910 = vmatprep.subr.mxu0 0.0
        %911 = vmatpush1.msra.mxu0 0.0
        %912 = vmatprep.subr.mxu0 0.0
        %913 = vmatpush1.msra.mxu0 0.0
        %914 = vmatprep.subr.mxu0 0.0
        %915 = vmatpush1.msra.mxu0 0.0
        %916 = vmatprep.mubr.f32.mxu0 0.0
        %v917 = vand.u32 %v597, 4294901760
        %v918 = vsub.f32 %v597, %v917
        %v919 = vand.u32 %v918, 4294901760
        %920 = vmatmul.mubr.f32.gmra.mrb[0].mxu0 %v919
        %v921 = vpop.f32.mrb[0].mxu0
        %v922 = vadd.f32 %v841, %v921
        %v923 = vpop.f32.mrb[0].mxu0
        %924 = vmatprep.mubr.f32.mxu0 0.0
        %v925 = vand.u32 %v600, 4294901760
        %v926 = vsub.f32 %v600, %v925
        %v927 = vand.u32 %v926, 4294901760
        %928 = vmatmul.mubr.f32.gmra.mrb[0].mxu0 %v927
        %v929 = vpop.f32.mrb[0].mxu0
        %v930 = vadd.f32 %v848, %v929
        %v931 = vpop.f32.mrb[0].mxu0
        %932 = vdwg.mxu0
        %933 = vmatprep.subr.mxu0 0.0
        %v934 = vand.u32 %v592, 4294901760
        %v935 = vsub.f32 %v592, %v934
        %v936 = vand.u32 %v935, 4294901760
        %937 = vmatpush1.msra.mxu0 %v936
        %938 = vmatprep.subr.mxu0 0.0
        %939 = vmatpush1.msra.mxu0 0.0
        %940 = vmatprep.subr.mxu0 0.0
        %941 = vmatpush1.msra.mxu0 0.0
        %942 = vmatprep.subr.mxu0 0.0
        %943 = vmatpush1.msra.mxu0 0.0
        %944 = vmatprep.subr.mxu0 0.0
        %945 = vmatpush1.msra.mxu0 0.0
        %946 = vmatprep.subr.mxu0 0.0
        %947 = vmatpush1.msra.mxu0 0.0
        %948 = vmatprep.subr.mxu0 0.0
        %949 = vmatpush1.msra.mxu0 0.0
        %950 = vmatprep.subr.mxu0 0.0
        %951 = vmatpush1.msra.mxu0 0.0
        %952 = vmatprep.subr.mxu0 0.0
        %953 = vmatpush1.msra.mxu0 0.0
        %954 = vmatprep.subr.mxu0 0.0
        %955 = vmatpush1.msra.mxu0 0.0
        %956 = vmatprep.subr.mxu0 0.0
        %957 = vmatpush1.msra.mxu0 0.0
        %958 = vmatprep.subr.mxu0 0.0
        %959 = vmatpush1.msra.mxu0 0.0
        %960 = vmatprep.subr.mxu0 0.0
        %961 = vmatpush1.msra.mxu0 0.0
        %962 = vmatprep.subr.mxu0 0.0
        %963 = vmatpush1.msra.mxu0 0.0
        %964 = vmatprep.subr.mxu0 0.0
        %965 = vmatpush1.msra.mxu0 0.0
        %966 = vmatprep.subr.mxu0 0.0
        %967 = vmatpush1.msra.mxu0 0.0
        %968 = vmatprep.subr.mxu0 0.0
        %969 = vmatpush1.msra.mxu0 0.0
        %970 = vmatprep.subr.mxu0 0.0
        %971 = vmatpush1.msra.mxu0 0.0
        %972 = vmatprep.subr.mxu0 0.0
        %973 = vmatpush1.msra.mxu0 0.0
        %974 = vmatprep.subr.mxu0 0.0
        %975 = vmatpush1.msra.mxu0 0.0
        %976 = vmatprep.subr.mxu0 0.0
        %977 = vmatpush1.msra.mxu0 0.0
        %978 = vmatprep.subr.mxu0 0.0
        %979 = vmatpush1.msra.mxu0 0.0
        %980 = vmatprep.subr.mxu0 0.0
        %981 = vmatpush1.msra.mxu0 0.0
        %982 = vmatprep.subr.mxu0 0.0
        %983 = vmatpush1.msra.mxu0 0.0
        %984 = vmatprep.subr.mxu0 0.0
        %985 = vmatpush1.msra.mxu0 0.0
        %986 = vmatprep.subr.mxu0 0.0
        %987 = vmatpush1.msra.mxu0 0.0
        %988 = vmatprep.subr.mxu0 0.0
        %989 = vmatpush1.msra.mxu0 0.0
        %990 = vmatprep.subr.mxu0 0.0
        %991 = vmatpush1.msra.mxu0 0.0
        %992 = vmatprep.subr.mxu0 0.0
        %993 = vmatpush1.msra.mxu0 0.0
        %994 = vmatprep.subr.mxu0 0.0
        %995 = vmatpush1.msra.mxu0 0.0
        %996 = vmatprep.subr.mxu0 0.0
        %997 = vmatpush1.msra.mxu0 0.0
        %998 = vmatprep.subr.mxu0 0.0
        %999 = vmatpush1.msra.mxu0 0.0
        %1000 = vmatprep.mubr.f32.mxu0 0.0
        %v1001 = vand.u32 %v597, 4294901760
        %1002 = vmatmul.mubr.f32.gmra.mrb[0].mxu0 %v1001
        %v1003 = vpop.f32.mrb[0].mxu0
        %v1004 = vadd.f32 %v922, %v1003
        %v1005 = vpop.f32.mrb[0].mxu0
        %1006 = vmatprep.mubr.f32.mxu0 0.0
        %v1007 = vand.u32 %v600, 4294901760
        %1008 = vmatmul.mubr.f32.gmra.mrb[0].mxu0 %v1007
        %v1009 = vpop.f32.mrb[0].mxu0
        %v1010 = vadd.f32 %v930, %v1009
        %v1011 = vpop.f32.mrb[0].mxu0
        %1012 = vdwg.mxu0
        %1013 = vmatprep.subr.mxu0 0.0
        %v1014 = vand.u32 %v592, 4294901760
        %1015 = vmatpush1.msra.mxu0 %v1014
        %1016 = vmatprep.subr.mxu0 0.0
        %1017 = vmatpush1.msra.mxu0 0.0
        %1018 = vmatprep.subr.mxu0 0.0
        %1019 = vmatpush1.msra.mxu0 0.0
        %1020 = vmatprep.subr.mxu0 0.0
        %1021 = vmatpush1.msra.mxu0 0.0
        %1022 = vmatprep.subr.mxu0 0.0
        %1023 = vmatpush1.msra.mxu0 0.0
        %1024 = vmatprep.subr.mxu0 0.0
        %1025 = vmatpush1.msra.mxu0 0.0
        %1026 = vmatprep.subr.mxu0 0.0
        %1027 = vmatpush1.msra.mxu0 0.0
        %1028 = vmatprep.subr.mxu0 0.0
        %1029 = vmatpush1.msra.mxu0 0.0
        %1030 = vmatprep.subr.mxu0 0.0
        %1031 = vmatpush1.msra.mxu0 0.0
        %1032 = vmatprep.subr.mxu0 0.0
        %1033 = vmatpush1.msra.mxu0 0.0
        %1034 = vmatprep.subr.mxu0 0.0
        %1035 = vmatpush1.msra.mxu0 0.0
        %1036 = vmatprep.subr.mxu0 0.0
        %1037 = vmatpush1.msra.mxu0 0.0
        %1038 = vmatprep.subr.mxu0 0.0
        %1039 = vmatpush1.msra.mxu0 0.0
        %1040 = vmatprep.subr.mxu0 0.0
        %1041 = vmatpush1.msra.mxu0 0.0
        %1042 = vmatprep.subr.mxu0 0.0
        %1043 = vmatpush1.msra.mxu0 0.0
        %1044 = vmatprep.subr.mxu0 0.0
        %1045 = vmatpush1.msra.mxu0 0.0
        %1046 = vmatprep.subr.mxu0 0.0
        %1047 = vmatpush1.msra.mxu0 0.0
        %1048 = vmatprep.subr.mxu0 0.0
        %1049 = vmatpush1.msra.mxu0 0.0
        %1050 = vmatprep.subr.mxu0 0.0
        %1051 = vmatpush1.msra.mxu0 0.0
        %1052 = vmatprep.subr.mxu0 0.0
        %1053 = vmatpush1.msra.mxu0 0.0
        %1054 = vmatprep.subr.mxu0 0.0
        %1055 = vmatpush1.msra.mxu0 0.0
        %1056 = vmatprep.subr.mxu0 0.0
        %1057 = vmatpush1.msra.mxu0 0.0
        %1058 = vmatprep.subr.mxu0 0.0
        %1059 = vmatpush1.msra.mxu0 0.0
        %1060 = vmatprep.subr.mxu0 0.0
        %1061 = vmatpush1.msra.mxu0 0.0
        %1062 = vmatprep.subr.mxu0 0.0
        %1063 = vmatpush1.msra.mxu0 0.0
        %1064 = vmatprep.subr.mxu0 0.0
        %1065 = vmatpush1.msra.mxu0 0.0
        %1066 = vmatprep.subr.mxu0 0.0
        %1067 = vmatpush1.msra.mxu0 0.0
        %1068 = vmatprep.subr.mxu0 0.0
        %1069 = vmatpush1.msra.mxu0 0.0
        %1070 = vmatprep.subr.mxu0 0.0
        %1071 = vmatpush1.msra.mxu0 0.0
        %1072 = vmatprep.subr.mxu0 0.0
        %1073 = vmatpush1.msra.mxu0 0.0
        %1074 = vmatprep.subr.mxu0 0.0
        %1075 = vmatpush1.msra.mxu0 0.0
        %1076 = vmatprep.subr.mxu0 0.0
        %1077 = vmatpush1.msra.mxu0 0.0
        %1078 = vmatprep.mubr.f32.mxu0 0.0
        %v1079 = vand.u32 %v597, 4294901760
        %1080 = vmatmul.mubr.f32.gmra.mrb[0].mxu0 %v1079
        %v1081 = vpop.f32.mrb[0].mxu0
        %v1082 = vadd.f32 %v1004, %v1081
        %v1083 = vpop.f32.mrb[0].mxu0
        %1084 = vmatprep.mubr.f32.mxu0 0.0
        %v1085 = vand.u32 %v600, 4294901760
        %1086 = vmatmul.mubr.f32.gmra.mrb[0].mxu0 %v1085
        %v1087 = vpop.f32.mrb[0].mxu0
        %v1088 = vadd.f32 %v1010, %v1087
        %v1089 = vpop.f32.mrb[0].mxu0
        %1090 = vdwg.mxu0
        %1091 = vst.msk [vmem:[%s263] sm:$0xff] %vm585, %v1082
        %vm1092 = vcmask 1024
        %1093 = vst.msk [vmem:[%s263 + $0x8] sm:$0x3] %vm1092, %v1088
      $region52: #{core_forward.1} parent=43 // pred_fallthru
        _
      %p1094 = scmp.lt.s32.totalorder %s21, 1
      %s1095 = scalar_select %p1094, %s21, 1
      %s1096 = smul.addr %s1095, 2
      %s1097 = smul.addr %s1096, 8
      %s1098 = scalar_lea.vmem %s6, %s1097
      // Predicated region
      $region53: #{core_forward.1} parent=43 // pred_check
        %p1099 = pneg %p178
      $region54: #{core_forward.1} parent=43 // pred_check_branch
        %1101 = sbr.rel (%p1099) target = $region56
      $region55: #{core_forward.1} parent=43 // pred_region
        _
      $region56: #{core_forward.1} parent=43 // pred_fallthru
        _
    $region44: #{core_forward.1} parent=5 // pred_fallthru
      _
    %p1102 = scmp.le.s32.totalorder 2, %s12
    // Predicated region
    $region57: #{core_forward.1} parent=5 // pred_check
      %p1103 = pneg %p1102
    $region58: #{core_forward.1} parent=5 // pred_check_branch
      %1105 = sbr.rel (%p1103) target = $region60
    $region59: #{core_forward.1} parent=5 // pred_region
      %s1106 = ssub.s32 %s12, 2
      // Predicated region
      $region61: #{core_forward.1} parent=59 // pred_check
        %p1107 = pneg %p184
      $region62: #{core_forward.1} parent=59 // pred_check_branch
        %1109 = sbr.rel (%p1107) target = $region64
      $region63: #{core_forward.1} parent=59 // pred_region
        %p1110 = scmp.lt.s32.totalorder %s23, 1
        %s1111 = scalar_select %p1110, %s23, 1
        %s1112 = smul.addr %s1111, 2
        %s1113 = smul.addr %s1112, 8
        %s1114 = scalar_lea.vmem %s6, %s1113
      $region64: #{core_forward.1} parent=59 // pred_fallthru
        _
    $region60: #{core_forward.1} parent=5 // pred_fallthru
      _
  $region6: #{core_forward.1} parent=0 // loop_footer
    %s16 = sadd.s32 1, %s12
  $region7: #{core_forward.1} parent=0 // loop_footer_branch
    %11 = sbr.rel target = $region3
  $region8: #{core_forward.1} parent=0 // loop_exit
    _

</llo_original>
